<compile_context>
chip_gen: v6e
topology: v6e:2x2x1
jax: 0.10.0
libtpu: 0.0.40
codegen_flags: <defaults>
</compile_context>

<pallas_src>
import functools

import jax
import jax.numpy as jnp
from jax.experimental import pallas as pl
from jax.experimental.pallas import tpu as pltpu


def _round_up(n, m):
    return ((n + m - 1) // m) * m


def _subtab_kernel(n_float, rep_dim,
                   x_ref,
                   ew1_ref, eb1_ref, ew2_ref, eb2_ref,
                   pw1_ref, pb1_ref,            # fused [linear_layer1 | decoder.hid1]
                   l2w_ref, l2b_ref,
                   dw2_ref, db2_ref,
                   out_ref):
    x = x_ref[...]

    # ---- encoder (Outcome_net): relu(Linear) -> relu(Linear) ----
    h = jnp.dot(x, ew1_ref[...], preferred_element_type=jnp.float32) + eb1_ref[...]
    h = jnp.maximum(h, 0.0)
    latent = jnp.dot(h, ew2_ref[...], preferred_element_type=jnp.float32) + eb2_ref[...]
    latent = jnp.maximum(latent, 0.0)

    # ---- fused MXU pass for the two consumers of `latent` ----
    # columns [0, rep_dim)        -> projection linear_layer1 (leaky_relu, slope 0.01)
    # columns [rep_dim, rep+hid)  -> decoder hid1             (relu)
    t = jnp.dot(latent, pw1_ref[...], preferred_element_type=jnp.float32) + pb1_ref[...]
    col_t = jax.lax.broadcasted_iota(jnp.int32, t.shape, 1)
    t = jnp.where(t > 0, t, jnp.where(col_t < rep_dim, 0.01 * t, 0.0))
    z1 = t[:, :rep_dim]
    d1 = t[:, rep_dim:]

    # ---- projection head layer 2 + L2 normalize (dim=1) via EUP rsqrt ----
    z = jnp.dot(z1, l2w_ref[...], preferred_element_type=jnp.float32) + l2b_ref[...]
    norm2 = jnp.sum(z * z, axis=1, keepdims=True)
    # F.normalize(p=2, dim=1): z / max(||z||, 1e-12)  ==  z * rsqrt(max(||z||^2, 1e-24))
    z = z * jax.lax.rsqrt(jnp.maximum(norm2, 1e-24))

    # ---- decoder layer 2: relu on first n_float cols, sigmoid on the rest ----
    d = jnp.dot(d1, dw2_ref[...], preferred_element_type=jnp.float32) + db2_ref[...]
    col_d = jax.lax.broadcasted_iota(jnp.int32, d.shape, 1)
    recon = jnp.where(col_d < n_float, jnp.maximum(d, 0.0), jax.nn.sigmoid(d))

    # ---- single lane-dense output slab: [z | latent | recon] ----
    out_ref[...] = jnp.concatenate([z, latent, recon], axis=1)


def subtab_forward(x, params, n_float, *, tile_b=256):
    """Run the SubTab forward pass in one batch-tiled Pallas kernel.

    x:      (B, in_dim) float32 input (stack all subsets along the batch axis!)
    params: dict of weights (in, out) and biases (1, out)
    n_float: static int split point for the decoder relu/sigmoid concat
    Returns (z, latent, x_recon).
    """
    B, in_dim = x.shape
    hidden = params["ew1"].shape[1]
    rep = params["ew2"].shape[1]
    out_dim = params["dw2"].shape[1]
    total_out = 2 * rep + out_dim

    # Fuse the two matmuls that consume `latent` into one weight/bias.
    pw1 = jnp.concatenate([params["l1w"], params["dw1"]], axis=1)   # (rep, rep+hidden)
    pb1 = jnp.concatenate([params["l1b"], params["db1"]], axis=1)   # (1,   rep+hidden)

    # Batch tile: sublane aligned, capped so the whole working set stays far
    # below v7x's 64 MiB VMEM (per row ~ (in+hidden+rep+rep+hidden+out) f32).
    tb = min(tile_b, _round_up(B, 8))
    b_pad = _round_up(B, tb)
    if b_pad != B:
        x = jnp.pad(x, ((0, b_pad - B), (0, 0)))
    grid = (b_pad // tb,)

    weight_args = (params["ew1"], params["eb1"], params["ew2"], params["eb2"],
                   pw1, pb1, params["l2w"], params["l2b"],
                   params["dw2"], params["db2"])
    args = (x,) + weight_args

    # Weights/biases use a constant index_map -> stay VMEM-resident across the
    # batch grid (the pipeline skips re-DMA when the block index is unchanged).
    in_specs = [pl.BlockSpec((tb, in_dim), lambda i: (i, 0))] + [
        pl.BlockSpec(w.shape, lambda i: (0, 0)) for w in weight_args
    ]
    out_specs = pl.BlockSpec((tb, total_out), lambda i: (i, 0))

    flops_per_row = 2 * (in_dim * hidden + hidden * rep + rep * (rep + hidden)
                         + rep * rep + hidden * out_dim)
    weight_bytes = sum(int(w.size) for w in weight_args) * 4
    cost = pl.CostEstimate(
        flops=b_pad * flops_per_row,
        transcendentals=b_pad * (out_dim + 1),           # sigmoid tile + rsqrt
        bytes_accessed=4 * b_pad * (in_dim + total_out) + weight_bytes,
    )

    out = pl.pallas_call(
        functools.partial(_subtab_kernel, n_float, rep),
        out_shape=jax.ShapeDtypeStruct((b_pad, total_out), jnp.float32),
        grid_spec=pltpu.PrefetchScalarGridSpec(
            num_scalar_prefetch=0,
            grid=grid,
            in_specs=in_specs,
            out_specs=out_specs,
        ),
        compiler_params=pltpu.CompilerParams(
            dimension_semantics=("parallel",),           # megacore split on v7x
            vmem_limit_bytes=32 * 1024 * 1024,           # safe on v5e/v6e/v7x
        ),
        cost_estimate=cost,
    )(*args)

    out = out[:B]
    z = out[:, :rep]
    latent = out[:, rep:2 * rep]
    x_recon = out[:, 2 * rep:]
    return z, latent, x_recon


def init_params(key, in_dim, rep_dim, out_dim, hidden_dim=32):
    """Deterministic synthetic parameter init (shapes follow SubTab.__init__)."""
    ks = jax.random.split(key, 8)
    s = 0.1

    def lin(k, fan_in, fan_out):
        kw, kb = jax.random.split(k)
        w = jax.random.normal(kw, (fan_in, fan_out), jnp.float32) * s
        b = jax.random.normal(kb, (1, fan_out), jnp.float32) * s
        return w, b

    ew1, eb1 = lin(ks[0], in_dim, hidden_dim)      # encoder hid1
    ew2, eb2 = lin(ks[1], hidden_dim, rep_dim)     # encoder hid2
    l1w, l1b = lin(ks[2], rep_dim, rep_dim)        # linear_layer1
    l2w, l2b = lin(ks[3], rep_dim, rep_dim)        # linear_layer2
    dw1, db1 = lin(ks[4], rep_dim, hidden_dim)     # decoder hid1
    dw2, db2 = lin(ks[5], hidden_dim, out_dim)     # decoder hid2
    return dict(ew1=ew1, eb1=eb1, ew2=ew2, eb2=eb2,
                l1w=l1w, l1b=l1b, l2w=l2w, l2b=l2b,
                dw1=dw1, db1=db1, dw2=dw2, db2=db2)


def reference_forward(x, p, n_float):
    """Pure-JAX reference of the same forward (PyTorch semantics)."""
    h = jnp.maximum(x @ p["ew1"] + p["eb1"], 0.0)
    latent = jnp.maximum(h @ p["ew2"] + p["eb2"], 0.0)
    z = latent @ p["l1w"] + p["l1b"]
    z = jnp.where(z > 0, z, 0.01 * z)
    z = z @ p["l2w"] + p["l2b"]
    z = z / jnp.maximum(jnp.sqrt(jnp.sum(z * z, axis=1, keepdims=True)), 1e-12)
    d = jnp.maximum(latent @ p["dw1"] + p["db1"], 0.0)
    d = d @ p["dw2"] + p["db2"]
    recon = jnp.concatenate(
        [jnp.maximum(d[:, :n_float], 0.0), jax.nn.sigmoid(d[:, n_float:])], axis=1)
    return z, latent, recon


if __name__ == "__main__":
    # SubTab config: outcome_dims=16, outcome_rep_dims=8, n_subsets=4, overlap=0.75
    outcome_dims = 16
    rep_dims = 8
    n_subsets = 4
    overlap_ratio = 0.75
    hidden_dim = 32
    n_column_subset = outcome_dims // n_subsets          # 4
    n_overlap = int(overlap_ratio * n_column_subset)     # 3
    in_dim = n_column_subset + n_overlap                 # 7 (encoder input dim)

    batch = 8
    # dt_dict = {'int': 6, 'float': 10}  -> split point = dt_dict['float'] = 10
    dt_dict = {"int": 6, "float": 10}
    n_float = list(dt_dict.values())[1]

    key = jax.random.PRNGKey(0)
    kx, kp = jax.random.split(key)
    x_full = jax.random.normal(kx, (batch, outcome_dims), jnp.float32)
    params = init_params(kp, in_dim, rep_dims, outcome_dims, hidden_dim)

    # Build the n_subsets column windows exactly like SubTab.subset_generator in
    # test mode (deterministic, no noise) and STACK them along the batch axis so
    # the shared encoder/decoder runs them all in one kernel call (4x MXU M).
    # TODO(synk): train-mode swap/gaussian noise + masking is host-side numpy
    # data prep in the original and is not part of this kernel.
    subsets = []
    for i in range(n_subsets):
        if i == 0:
            start, stop = 0, n_column_subset + n_overlap
        else:
            start, stop = i * n_column_subset - n_overlap, (i + 1) * n_column_subset
        subsets.append(x_full[:, start:stop])
    x_stacked = jnp.concatenate(subsets, axis=0)          # (n_subsets*batch, in_dim)

    z, latent, x_recon = subtab_forward(x_stacked, params, n_float)
    jax.block_until_ready((z, latent, x_recon))

    # sanity check against pure-JAX reference
    z_r, lat_r, rec_r = reference_forward(x_stacked, params, n_float)
    assert jnp.allclose(z, z_r, atol=1e-5), "z mismatch"
    assert jnp.allclose(latent, lat_r, atol=1e-5), "latent mismatch"
    assert jnp.allclose(x_recon, rec_r, atol=1e-5), "recon mismatch"

    print("KERNEL_OK")
</pallas_src>

<mosaic_0001>
module attributes {stable_mosaic.version = 11 : i64} {
  func.func @_subtab_kernel(%arg0: i32, %arg1: memref<32x7xf32, #tpu.memory_space<vmem>>, %arg2: memref<7x32xf32, #tpu.memory_space<vmem>>, %arg3: memref<1x32xf32, #tpu.memory_space<vmem>>, %arg4: memref<32x8xf32, #tpu.memory_space<vmem>>, %arg5: memref<1x8xf32, #tpu.memory_space<vmem>>, %arg6: memref<8x40xf32, #tpu.memory_space<vmem>>, %arg7: memref<1x40xf32, #tpu.memory_space<vmem>>, %arg8: memref<8x8xf32, #tpu.memory_space<vmem>>, %arg9: memref<1x8xf32, #tpu.memory_space<vmem>>, %arg10: memref<32x16xf32, #tpu.memory_space<vmem>>, %arg11: memref<1x16xf32, #tpu.memory_space<vmem>>, %arg12: memref<32x32xf32, #tpu.memory_space<vmem>>) attributes {dimension_semantics = [#tpu.dimension_semantics<parallel>], iteration_bounds = array<i64: 1>, scalar_prefetch = 0 : i64, scratch_operands = 0 : i64, tpu.core_type = #tpu.core_type<tc>, window_params = [{transform_indices = @transform_0, window_bounds = array<i64: 32, 7>}, {pipeline_mode = #tpu.pipeline_mode<synchronous>, transform_indices = @transform_1, window_bounds = array<i64: 7, 32>}, {pipeline_mode = #tpu.pipeline_mode<synchronous>, transform_indices = @transform_2, window_bounds = array<i64: 1, 32>}, {pipeline_mode = #tpu.pipeline_mode<synchronous>, transform_indices = @transform_3, window_bounds = array<i64: 32, 8>}, {pipeline_mode = #tpu.pipeline_mode<synchronous>, transform_indices = @transform_4, window_bounds = array<i64: 1, 8>}, {pipeline_mode = #tpu.pipeline_mode<synchronous>, transform_indices = @transform_5, window_bounds = array<i64: 8, 40>}, {pipeline_mode = #tpu.pipeline_mode<synchronous>, transform_indices = @transform_6, window_bounds = array<i64: 1, 40>}, {pipeline_mode = #tpu.pipeline_mode<synchronous>, transform_indices = @transform_7, window_bounds = array<i64: 8, 8>}, {pipeline_mode = #tpu.pipeline_mode<synchronous>, transform_indices = @transform_8, window_bounds = array<i64: 1, 8>}, {pipeline_mode = #tpu.pipeline_mode<synchronous>, transform_indices = @transform_9, window_bounds = array<i64: 32, 16>}, {pipeline_mode = #tpu.pipeline_mode<synchronous>, transform_indices = @transform_10, window_bounds = array<i64: 1, 16>}, {transform_indices = @transform_11, window_bounds = array<i64: 32, 32>}]} {
    %c0 = arith.constant 0 : index
    %c0_0 = arith.constant 0 : index
    %0 = vector.load %arg1[%c0, %c0_0] : memref<32x7xf32, #tpu.memory_space<vmem>>, vector<32x7xf32>
    %c0_1 = arith.constant 0 : index
    %c0_2 = arith.constant 0 : index
    %1 = vector.load %arg2[%c0_1, %c0_2] : memref<7x32xf32, #tpu.memory_space<vmem>>, vector<7x32xf32>
    %cst = arith.constant dense<0.000000e+00> : vector<32x32xf32>
    %2 = tpu.matmul %0, %1, %cst {dimension_numbers = #tpu.dot_dimension_numbers<[1], [0], [0], [1], [0, 0, 1, 1], [], []>} : vector<32x7xf32>, vector<7x32xf32>, vector<32x32xf32> -> vector<32x32xf32>
    %c0_3 = arith.constant 0 : index
    %c0_4 = arith.constant 0 : index
    %3 = vector.load %arg3[%c0_3, %c0_4] : memref<1x32xf32, #tpu.memory_space<vmem>>, vector<1x32xf32>
    %4 = vector.broadcast %3 : vector<1x32xf32> to vector<32x32xf32>
    %5 = arith.addf %2, %4 : vector<32x32xf32>
    %cst_5 = arith.constant 0.000000e+00 : f32
    %6 = vector.broadcast %cst_5 : f32 to vector<32x32xf32>
    %7 = arith.maximumf %5, %6 : vector<32x32xf32>
    %c0_6 = arith.constant 0 : index
    %c0_7 = arith.constant 0 : index
    %8 = vector.load %arg4[%c0_6, %c0_7] : memref<32x8xf32, #tpu.memory_space<vmem>>, vector<32x8xf32>
    %cst_8 = arith.constant dense<0.000000e+00> : vector<32x8xf32>
    %9 = tpu.matmul %7, %8, %cst_8 {dimension_numbers = #tpu.dot_dimension_numbers<[1], [0], [0], [1], [0, 0, 1, 1], [], []>} : vector<32x32xf32>, vector<32x8xf32>, vector<32x8xf32> -> vector<32x8xf32>
    %c0_9 = arith.constant 0 : index
    %c0_10 = arith.constant 0 : index
    %10 = vector.load %arg5[%c0_9, %c0_10] : memref<1x8xf32, #tpu.memory_space<vmem>>, vector<1x8xf32>
    %11 = vector.broadcast %10 : vector<1x8xf32> to vector<32x8xf32>
    %12 = arith.addf %9, %11 : vector<32x8xf32>
    %cst_11 = arith.constant 0.000000e+00 : f32
    %13 = vector.broadcast %cst_11 : f32 to vector<32x8xf32>
    %14 = arith.maximumf %12, %13 : vector<32x8xf32>
    %c0_12 = arith.constant 0 : index
    %c0_13 = arith.constant 0 : index
    %15 = vector.load %arg6[%c0_12, %c0_13] : memref<8x40xf32, #tpu.memory_space<vmem>>, vector<8x40xf32>
    %cst_14 = arith.constant dense<0.000000e+00> : vector<32x40xf32>
    %16 = tpu.matmul %14, %15, %cst_14 {dimension_numbers = #tpu.dot_dimension_numbers<[1], [0], [0], [1], [0, 0, 1, 1], [], []>} : vector<32x8xf32>, vector<8x40xf32>, vector<32x40xf32> -> vector<32x40xf32>
    %c0_15 = arith.constant 0 : index
    %c0_16 = arith.constant 0 : index
    %17 = vector.load %arg7[%c0_15, %c0_16] : memref<1x40xf32, #tpu.memory_space<vmem>>, vector<1x40xf32>
    %18 = vector.broadcast %17 : vector<1x40xf32> to vector<32x40xf32>
    %19 = arith.addf %16, %18 : vector<32x40xf32>
    %20 = tpu.iota {dimensions = array<i32: 1>} : vector<32x40xi32>
    %cst_17 = arith.constant 0.000000e+00 : f32
    %21 = vector.broadcast %cst_17 : f32 to vector<32x40xf32>
    %22 = arith.cmpf ogt, %19, %21 : vector<32x40xf32>
    %c8_i32 = arith.constant 8 : i32
    %23 = vector.broadcast %c8_i32 : i32 to vector<32x40xi32>
    %24 = arith.cmpi slt, %20, %23 : vector<32x40xi32>
    %cst_18 = arith.constant 0.00999999977 : f32
    %25 = vector.broadcast %cst_18 : f32 to vector<32x40xf32>
    %26 = arith.mulf %25, %19 : vector<32x40xf32>
    %cst_19 = arith.constant 0.000000e+00 : f32
    %27 = vector.broadcast %cst_19 : f32 to vector<32x40xf32>
    %28 = arith.select %24, %26, %27 : vector<32x40xi1>, vector<32x40xf32>
    %29 = arith.select %22, %19, %28 : vector<32x40xi1>, vector<32x40xf32>
    %30 = vector.extract_strided_slice %29 {offsets = [0, 0], sizes = [32, 8], strides = [1, 1]} : vector<32x40xf32> to vector<32x8xf32>
    %31 = vector.extract_strided_slice %29 {offsets = [0, 8], sizes = [32, 32], strides = [1, 1]} : vector<32x40xf32> to vector<32x32xf32>
    %c0_20 = arith.constant 0 : index
    %c0_21 = arith.constant 0 : index
    %32 = vector.load %arg8[%c0_20, %c0_21] : memref<8x8xf32, #tpu.memory_space<vmem>>, vector<8x8xf32>
    %cst_22 = arith.constant dense<0.000000e+00> : vector<32x8xf32>
    %33 = tpu.matmul %30, %32, %cst_22 {dimension_numbers = #tpu.dot_dimension_numbers<[1], [0], [0], [1], [0, 0, 1, 1], [], []>} : vector<32x8xf32>, vector<8x8xf32>, vector<32x8xf32> -> vector<32x8xf32>
    %c0_23 = arith.constant 0 : index
    %c0_24 = arith.constant 0 : index
    %34 = vector.load %arg9[%c0_23, %c0_24] : memref<1x8xf32, #tpu.memory_space<vmem>>, vector<1x8xf32>
    %35 = vector.broadcast %34 : vector<1x8xf32> to vector<32x8xf32>
    %36 = arith.addf %33, %35 : vector<32x8xf32>
    %37 = arith.mulf %36, %36 : vector<32x8xf32>
    %cst_25 = arith.constant dense<0.000000e+00> : vector<32xf32>
    %38 = vector.multi_reduction <add>, %37, %cst_25 [1] : vector<32x8xf32> to vector<32xf32>
    %39 = vector.shape_cast %38 : vector<32xf32> to vector<32x1xf32>
    %cst_26 = arith.constant 1.000000e-24 : f32
    %40 = vector.broadcast %cst_26 : f32 to vector<32x1xf32>
    %41 = arith.maximumf %39, %40 : vector<32x1xf32>
    %42 = math.rsqrt %41 : vector<32x1xf32>
    %43 = vector.broadcast %42 : vector<32x1xf32> to vector<32x8xf32>
    %44 = arith.mulf %36, %43 : vector<32x8xf32>
    %c0_27 = arith.constant 0 : index
    %c0_28 = arith.constant 0 : index
    %45 = vector.load %arg10[%c0_27, %c0_28] : memref<32x16xf32, #tpu.memory_space<vmem>>, vector<32x16xf32>
    %cst_29 = arith.constant dense<0.000000e+00> : vector<32x16xf32>
    %46 = tpu.matmul %31, %45, %cst_29 {dimension_numbers = #tpu.dot_dimension_numbers<[1], [0], [0], [1], [0, 0, 1, 1], [], []>} : vector<32x32xf32>, vector<32x16xf32>, vector<32x16xf32> -> vector<32x16xf32>
    %c0_30 = arith.constant 0 : index
    %c0_31 = arith.constant 0 : index
    %47 = vector.load %arg11[%c0_30, %c0_31] : memref<1x16xf32, #tpu.memory_space<vmem>>, vector<1x16xf32>
    %48 = vector.broadcast %47 : vector<1x16xf32> to vector<32x16xf32>
    %49 = arith.addf %46, %48 : vector<32x16xf32>
    %50 = tpu.iota {dimensions = array<i32: 1>} : vector<32x16xi32>
    %c10_i32 = arith.constant 10 : i32
    %51 = vector.broadcast %c10_i32 : i32 to vector<32x16xi32>
    %52 = arith.cmpi slt, %50, %51 : vector<32x16xi32>
    %cst_32 = arith.constant 0.000000e+00 : f32
    %53 = vector.broadcast %cst_32 : f32 to vector<32x16xf32>
    %54 = arith.maximumf %49, %53 : vector<32x16xf32>
    %55 = arith.negf %49 : vector<32x16xf32>
    %56 = math.exp %55 : vector<32x16xf32>
    %cst_33 = arith.constant 1.000000e+00 : f32
    %57 = vector.broadcast %cst_33 : f32 to vector<32x16xf32>
    %58 = arith.addf %57, %56 : vector<32x16xf32>
    %59 = arith.divf %57, %58 : vector<32x16xf32>
    %60 = arith.select %52, %54, %59 : vector<32x16xi1>, vector<32x16xf32>
    %61 = tpu.concatenate %44, %14, %60 in 1 : vector<32x8xf32>, vector<32x8xf32>, vector<32x16xf32> -> vector<32x32xf32>
    %c0_34 = arith.constant 0 : index
    %c0_35 = arith.constant 0 : index
    %62 = vector.load %arg12[%c0_34, %c0_35] : memref<32x32xf32, #tpu.memory_space<vmem>>, vector<32x32xf32>
    tpu.vector_store %arg12[%c0_34, %c0_35], %61 {strides = array<i32>} : memref<32x32xf32, #tpu.memory_space<vmem>>, vector<32x32xf32>,
    return
  }
  func.func @transform_0(%arg0: i32) -> (i32, i32) {
    %c0_i32 = arith.constant 0 : i32
    %c0_i32_0 = arith.constant 0 : i32
    return %arg0, %c0_i32 : i32, i32
  }
  func.func @transform_1(%arg0: i32) -> (i32, i32) {
    %c0_i32 = arith.constant 0 : i32
    %c0_i32_0 = arith.constant 0 : i32
    %c0_i32_1 = arith.constant 0 : i32
    return %c0_i32, %c0_i32_0 : i32, i32
  }
  func.func @transform_2(%arg0: i32) -> (i32, i32) {
    %c0_i32 = arith.constant 0 : i32
    %c0_i32_0 = arith.constant 0 : i32
    %c0_i32_1 = arith.constant 0 : i32
    return %c0_i32, %c0_i32_0 : i32, i32
  }
  func.func @transform_3(%arg0: i32) -> (i32, i32) {
    %c0_i32 = arith.constant 0 : i32
    %c0_i32_0 = arith.constant 0 : i32
    %c0_i32_1 = arith.constant 0 : i32
    return %c0_i32, %c0_i32_0 : i32, i32
  }
  func.func @transform_4(%arg0: i32) -> (i32, i32) {
    %c0_i32 = arith.constant 0 : i32
    %c0_i32_0 = arith.constant 0 : i32
    %c0_i32_1 = arith.constant 0 : i32
    return %c0_i32, %c0_i32_0 : i32, i32
  }
  func.func @transform_5(%arg0: i32) -> (i32, i32) {
    %c0_i32 = arith.constant 0 : i32
    %c0_i32_0 = arith.constant 0 : i32
    %c0_i32_1 = arith.constant 0 : i32
    return %c0_i32, %c0_i32_0 : i32, i32
  }
  func.func @transform_6(%arg0: i32) -> (i32, i32) {
    %c0_i32 = arith.constant 0 : i32
    %c0_i32_0 = arith.constant 0 : i32
    %c0_i32_1 = arith.constant 0 : i32
    return %c0_i32, %c0_i32_0 : i32, i32
  }
  func.func @transform_7(%arg0: i32) -> (i32, i32) {
    %c0_i32 = arith.constant 0 : i32
    %c0_i32_0 = arith.constant 0 : i32
    %c0_i32_1 = arith.constant 0 : i32
    return %c0_i32, %c0_i32_0 : i32, i32
  }
  func.func @transform_8(%arg0: i32) -> (i32, i32) {
    %c0_i32 = arith.constant 0 : i32
    %c0_i32_0 = arith.constant 0 : i32
    %c0_i32_1 = arith.constant 0 : i32
    return %c0_i32, %c0_i32_0 : i32, i32
  }
  func.func @transform_9(%arg0: i32) -> (i32, i32) {
    %c0_i32 = arith.constant 0 : i32
    %c0_i32_0 = arith.constant 0 : i32
    %c0_i32_1 = arith.constant 0 : i32
    return %c0_i32, %c0_i32_0 : i32, i32
  }
  func.func @transform_10(%arg0: i32) -> (i32, i32) {
    %c0_i32 = arith.constant 0 : i32
    %c0_i32_0 = arith.constant 0 : i32
    %c0_i32_1 = arith.constant 0 : i32
    return %c0_i32, %c0_i32_0 : i32, i32
  }
  func.func @transform_11(%arg0: i32) -> (i32, i32) {
    %c0_i32 = arith.constant 0 : i32
    %c0_i32_0 = arith.constant 0 : i32
    return %arg0, %c0_i32 : i32, i32
  }
}

</mosaic_0001>

<llo_original>
// kernel: tpu_custom_call.1
$region0: #{tpu_custom_call.1}
  #allocation0 [shape = 'u32[]', space=smem, size = 0x4, offset = 0x4, fixed_abs, tag = 'smem constant byte address 0x4 - core index']
  #allocation1 [shape = 'u32[144,128]{1,0:T(1,128)}', space=vmem, size = 0x12000, scoped, tag = 'internal scratch']
  %s0 = inlined_call_operand.vmem [shape: f32[32,7], index: 0, kind: input, shape index: {}]
  %s1 = inlined_call_operand.vmem [shape: f32[7,32], index: 1, kind: input, shape index: {}]
  %s2 = inlined_call_operand.vmem [shape: f32[1,32], index: 2, kind: input, shape index: {}]
  %s3 = inlined_call_operand.vmem [shape: f32[32,8], index: 3, kind: input, shape index: {}]
  %s4 = inlined_call_operand.vmem [shape: f32[1,8], index: 4, kind: input, shape index: {}]
  %s5 = inlined_call_operand.vmem [shape: f32[8,40], index: 5, kind: input, shape index: {}]
  %s6 = inlined_call_operand.vmem [shape: f32[1,40], index: 6, kind: input, shape index: {}]
  %s7 = inlined_call_operand.vmem [shape: f32[8,8], index: 7, kind: input, shape index: {}]
  %s8 = inlined_call_operand.vmem [shape: f32[1,8], index: 8, kind: input, shape index: {}]
  %s9 = inlined_call_operand.vmem [shape: f32[32,16], index: 9, kind: input, shape index: {}]
  %s10 = inlined_call_operand.vmem [shape: f32[1,16], index: 10, kind: input, shape index: {}]
  %s11 = inlined_call_operand.hbm [shape: f32[32,32], index: 11, kind: output, shape index: {}]
  %s12 = sld [smem:[#allocation0]]
  $region54: #{tpu_custom_call.1} parent=0
    _
  %s14 = ssub.s32 1, %s12
  %s15 = scalar_select 0, %s14, %s12
  $region1: #{tpu_custom_call.1} parent=0
    #allocation2 [shape = 'u8[16384]{0}', space=vmem, size = 0x4000, scoped, tag = 'output window, operand 0, single buffered']
    #allocation3 [shape = 's32[1]{0}', space=sflag, size = 0x4, scoped, tag = 'scoped memory for tpu_custom_call.1']
    %16 = vsyncpa [#allocation3], 0
    // Predicated region
    $region2: #{tpu_custom_call.1} parent=1 // pred_check
      _
    $region3: #{tpu_custom_call.1} parent=1 // pred_check_branch
      %18 = sbr.rel (0) target = $region5
    $region4: #{tpu_custom_call.1} parent=1 // pred_region
      _
    $region5: #{tpu_custom_call.1} parent=1 // pred_fallthru
      _
    // Predicated region
    $region6: #{tpu_custom_call.1} parent=1 // pred_check
      _
    $region7: #{tpu_custom_call.1} parent=1 // pred_check_branch
      %20 = sbr.rel (0) target = $region9
    $region8: #{tpu_custom_call.1} parent=1 // pred_region
      _
    $region9: #{tpu_custom_call.1} parent=1 // pred_fallthru
      _
    // Predicated region
    $region10: #{tpu_custom_call.1} parent=1 // pred_check
      _
    $region11: #{tpu_custom_call.1} parent=1 // pred_check_branch
      %22 = sbr.rel (0) target = $region13
    $region12: #{tpu_custom_call.1} parent=1 // pred_region
      _
    $region13: #{tpu_custom_call.1} parent=1 // pred_fallthru
      _
    // Predicated region
    $region14: #{tpu_custom_call.1} parent=1 // pred_check
      _
    $region15: #{tpu_custom_call.1} parent=1 // pred_check_branch
      %24 = sbr.rel (0) target = $region17
    $region16: #{tpu_custom_call.1} parent=1 // pred_region
      _
    $region17: #{tpu_custom_call.1} parent=1 // pred_fallthru
      _
    // Predicated region
    $region18: #{tpu_custom_call.1} parent=1 // pred_check
      _
    $region19: #{tpu_custom_call.1} parent=1 // pred_check_branch
      %26 = sbr.rel (0) target = $region21
    $region20: #{tpu_custom_call.1} parent=1 // pred_region
      _
    $region21: #{tpu_custom_call.1} parent=1 // pred_fallthru
      _
    // Predicated region
    $region22: #{tpu_custom_call.1} parent=1 // pred_check
      _
    $region23: #{tpu_custom_call.1} parent=1 // pred_check_branch
      %28 = sbr.rel (0) target = $region25
    $region24: #{tpu_custom_call.1} parent=1 // pred_region
      _
    $region25: #{tpu_custom_call.1} parent=1 // pred_fallthru
      _
    // Predicated region
    $region26: #{tpu_custom_call.1} parent=1 // pred_check
      _
    $region27: #{tpu_custom_call.1} parent=1 // pred_check_branch
      %30 = sbr.rel (0) target = $region29
    $region28: #{tpu_custom_call.1} parent=1 // pred_region
      _
    $region29: #{tpu_custom_call.1} parent=1 // pred_fallthru
      _
    // Predicated region
    $region30: #{tpu_custom_call.1} parent=1 // pred_check
      _
    $region31: #{tpu_custom_call.1} parent=1 // pred_check_branch
      %32 = sbr.rel (0) target = $region33
    $region32: #{tpu_custom_call.1} parent=1 // pred_region
      _
    $region33: #{tpu_custom_call.1} parent=1 // pred_fallthru
      _
    // Predicated region
    $region34: #{tpu_custom_call.1} parent=1 // pred_check
      _
    $region35: #{tpu_custom_call.1} parent=1 // pred_check_branch
      %34 = sbr.rel (0) target = $region37
    $region36: #{tpu_custom_call.1} parent=1 // pred_region
      _
    $region37: #{tpu_custom_call.1} parent=1 // pred_fallthru
      _
    // Predicated region
    $region38: #{tpu_custom_call.1} parent=1 // pred_check
      _
    $region39: #{tpu_custom_call.1} parent=1 // pred_check_branch
      %36 = sbr.rel (0) target = $region41
    $region40: #{tpu_custom_call.1} parent=1 // pred_region
      _
    $region41: #{tpu_custom_call.1} parent=1 // pred_fallthru
      _
    // Predicated region
    $region42: #{tpu_custom_call.1} parent=1 // pred_check
      _
    $region43: #{tpu_custom_call.1} parent=1 // pred_check_branch
      %38 = sbr.rel (0) target = $region45
    $region44: #{tpu_custom_call.1} parent=1 // pred_region
      _
    $region45: #{tpu_custom_call.1} parent=1 // pred_fallthru
      _
    %v39 = vld [vmem:[%s0] sm:$0xff]
    %v40 = vld [vmem:[%s0 + $0x8] sm:$0xff]
    %v41 = vld [vmem:[%s0 + $0x10] sm:$0xff]
    %v42 = vld [vmem:[%s0 + $0x18] sm:$0xff]
    %v43 = vld [vmem:[%s1] sm:$0x7f]
    %v44 = vld [vmem:[%s2] sm:$0x1]
    %v46 = vlaneseq
    %v47 = vshrl.u32 %v46, 7
    %v48 = vsub.s32 0, %v47
    %v49 = vrot.slane %v44, %v48
    %vm51 = vcmask 56320
    %v53 = vsel %vm51, %v39, 0
    %v56 = vsel %vm51, %v40, 0
    %v59 = vsel %vm51, %v41, 0
    %v62 = vsel %vm51, %v42, 0
    %vm64 = vcmask 1046528
    %v66 = vsel %vm64, %v43, 0
    %68 = vmatprep.subr.mxu0 0.0
    %69 = vmatpush1.msra.mxu0 0.0
    %70 = vmatprep.subr.mxu0 0.0
    %71 = vmatpush1.msra.mxu0 0.0
    %72 = vmatprep.subr.mxu0 0.0
    %73 = vmatpush1.msra.mxu0 0.0
    %74 = vmatprep.subr.mxu0 0.0
    %75 = vmatpush1.msra.mxu0 0.0
    %76 = vmatprep.subr.mxu0 0.0
    %77 = vmatpush1.msra.mxu0 0.0
    %78 = vmatprep.subr.mxu0 0.0
    %79 = vmatpush1.msra.mxu0 0.0
    %80 = vmatprep.subr.mxu0 0.0
    %81 = vmatpush1.msra.mxu0 0.0
    %82 = vmatprep.subr.mxu0 0.0
    %83 = vmatpush1.msra.mxu0 0.0
    %84 = vmatprep.subr.mxu0 0.0
    %85 = vmatpush1.msra.mxu0 0.0
    %86 = vmatprep.subr.mxu0 0.0
    %87 = vmatpush1.msra.mxu0 0.0
    %88 = vmatprep.subr.mxu0 0.0
    %89 = vmatpush1.msra.mxu0 0.0
    %90 = vmatprep.subr.mxu0 0.0
    %91 = vmatpush1.msra.mxu0 0.0
    %92 = vmatprep.subr.mxu0 0.0
    %93 = vmatpush1.msra.mxu0 0.0
    %94 = vmatprep.subr.mxu0 0.0
    %95 = vmatpush1.msra.mxu0 0.0
    %96 = vmatprep.subr.mxu0 0.0
    %97 = vmatpush1.msra.mxu0 0.0
    %98 = vmatprep.subr.mxu0 0.0
    %99 = vmatpush1.msra.mxu0 %v66
    %100 = vmatprep.subr.mxu0 0.0
    %101 = vmatpush2.msra.mxu0 0.0
    %102 = vmatprep.subr.mxu0 0.0
    %103 = vmatpush2.msra.mxu0 0.0
    %104 = vmatprep.subr.mxu0 0.0
    %105 = vmatpush2.msra.mxu0 0.0
    %106 = vmatprep.subr.mxu0 0.0
    %107 = vmatpush2.msra.mxu0 0.0
    %108 = vmatprep.subr.mxu0 0.0
    %109 = vmatpush2.msra.mxu0 0.0
    %110 = vmatprep.subr.mxu0 0.0
    %111 = vmatpush2.msra.mxu0 0.0
    %112 = vmatprep.subr.mxu0 0.0
    %113 = vmatpush2.msra.mxu0 0.0
    %114 = vmatprep.subr.mxu0 0.0
    %115 = vmatpush2.msra.mxu0 0.0
    %116 = vmatprep.subr.mxu0 0.0
    %117 = vmatpush2.msra.mxu0 0.0
    %118 = vmatprep.subr.mxu0 0.0
    %119 = vmatpush2.msra.mxu0 0.0
    %120 = vmatprep.subr.mxu0 0.0
    %121 = vmatpush2.msra.mxu0 0.0
    %122 = vmatprep.subr.mxu0 0.0
    %123 = vmatpush2.msra.mxu0 0.0
    %124 = vmatprep.subr.mxu0 0.0
    %125 = vmatpush2.msra.mxu0 0.0
    %126 = vmatprep.subr.mxu0 0.0
    %127 = vmatpush2.msra.mxu0 0.0
    %128 = vmatprep.subr.mxu0 0.0
    %129 = vmatpush2.msra.mxu0 0.0
    %130 = vmatprep.subr.mxu0 0.0
    %131 = vmatpush2.msra.mxu0 0.0
    %132 = vmatprep.mubr.f32.mxu0 0.0
    %133 = vmatmul.mubr.f32.gmra.mxu0 %v53
    %v134 = vpop.f32.mrf.mxu0
    %v135 = vadd.f32 %v49, %v134
    %v136 = vpop.f32.mrf.mxu0
    %137 = vmatprep.mubr.f32.mxu0 0.0
    %138 = vmatmul.mubr.f32.gmra.mxu0 %v56
    %v139 = vpop.f32.mrf.mxu0
    %v140 = vadd.f32 %v49, %v139
    %v141 = vpop.f32.mrf.mxu0
    %142 = vmatprep.mubr.f32.mxu0 0.0
    %143 = vmatmul.mubr.f32.gmra.mxu0 %v59
    %v144 = vpop.f32.mrf.mxu0
    %v145 = vadd.f32 %v49, %v144
    %v146 = vpop.f32.mrf.mxu0
    %147 = vmatprep.mubr.f32.mxu0 0.0
    %148 = vmatmul.mubr.f32.gmra.mxu0 %v62
    %v149 = vpop.f32.mrf.mxu0
    %v150 = vadd.f32 %v49, %v149
    %v151 = vpop.f32.mrf.mxu0
    %152 = vdwg.mxu0
    %v153 = vmax.f32 %v135, 0.0
    %v154 = vmax.f32 %v140, 0.0
    %v155 = vmax.f32 %v145, 0.0
    %v156 = vmax.f32 %v150, 0.0
    %v157 = vld [vmem:[%s3] sm:$0xff]
    %v158 = vld [vmem:[%s3 + $0x8] sm:$0xff]
    %v159 = vld [vmem:[%s3 + $0x10] sm:$0xff]
    %v160 = vld [vmem:[%s3 + $0x18] sm:$0xff]
    %v161 = vld [vmem:[%s4] sm:$0x1]
    %v163 = vlaneseq
    %v164 = vshrl.u32 %v163, 7
    %v165 = vsub.s32 0, %v164
    %v166 = vrot.slane %v161, %v165
    %vm168 = vcmask 261120
    %v170 = vsel %vm168, %v153, 0
    %v173 = vsel %vm168, %v154, 0
    %v176 = vsel %vm168, %v155, 0
    %v179 = vsel %vm168, %v156, 0
    %181 = vmatprep.subr.mxu0 0.0
    %182 = vmatpush1.msra.mxu0 0.0
    %183 = vmatprep.subr.mxu0 0.0
    %184 = vmatpush1.msra.mxu0 0.0
    %185 = vmatprep.subr.mxu0 0.0
    %186 = vmatpush1.msra.mxu0 0.0
    %187 = vmatprep.subr.mxu0 0.0
    %188 = vmatpush1.msra.mxu0 0.0
    %189 = vmatprep.subr.mxu0 0.0
    %190 = vmatpush1.msra.mxu0 0.0
    %191 = vmatprep.subr.mxu0 0.0
    %192 = vmatpush1.msra.mxu0 0.0
    %193 = vmatprep.subr.mxu0 0.0
    %194 = vmatpush1.msra.mxu0 0.0
    %195 = vmatprep.subr.mxu0 0.0
    %196 = vmatpush1.msra.mxu0 0.0
    %197 = vmatprep.subr.mxu0 0.0
    %198 = vmatpush1.msra.mxu0 0.0
    %199 = vmatprep.subr.mxu0 0.0
    %200 = vmatpush1.msra.mxu0 0.0
    %201 = vmatprep.subr.mxu0 0.0
    %202 = vmatpush1.msra.mxu0 0.0
    %203 = vmatprep.subr.mxu0 0.0
    %204 = vmatpush1.msra.mxu0 0.0
    %205 = vmatprep.subr.mxu0 0.0
    %206 = vmatpush1.msra.mxu0 %v160
    %207 = vmatprep.subr.mxu0 0.0
    %208 = vmatpush1.msra.mxu0 %v159
    %209 = vmatprep.subr.mxu0 0.0
    %210 = vmatpush1.msra.mxu0 %v158
    %211 = vmatprep.subr.mxu0 0.0
    %212 = vmatpush1.msra.mxu0 %v157
    %213 = vmatprep.subr.mxu0 0.0
    %214 = vmatpush2.msra.mxu0 0.0
    %215 = vmatprep.subr.mxu0 0.0
    %216 = vmatpush2.msra.mxu0 0.0
    %217 = vmatprep.subr.mxu0 0.0
    %218 = vmatpush2.msra.mxu0 0.0
    %219 = vmatprep.subr.mxu0 0.0
    %220 = vmatpush2.msra.mxu0 0.0
    %221 = vmatprep.subr.mxu0 0.0
    %222 = vmatpush2.msra.mxu0 0.0
    %223 = vmatprep.subr.mxu0 0.0
    %224 = vmatpush2.msra.mxu0 0.0
    %225 = vmatprep.subr.mxu0 0.0
    %226 = vmatpush2.msra.mxu0 0.0
    %227 = vmatprep.subr.mxu0 0.0
    %228 = vmatpush2.msra.mxu0 0.0
    %229 = vmatprep.subr.mxu0 0.0
    %230 = vmatpush2.msra.mxu0 0.0
    %231 = vmatprep.subr.mxu0 0.0
    %232 = vmatpush2.msra.mxu0 0.0
    %233 = vmatprep.subr.mxu0 0.0
    %234 = vmatpush2.msra.mxu0 0.0
    %235 = vmatprep.subr.mxu0 0.0
    %236 = vmatpush2.msra.mxu0 0.0
    %237 = vmatprep.subr.mxu0 0.0
    %238 = vmatpush2.msra.mxu0 0.0
    %239 = vmatprep.subr.mxu0 0.0
    %240 = vmatpush2.msra.mxu0 0.0
    %241 = vmatprep.subr.mxu0 0.0
    %242 = vmatpush2.msra.mxu0 0.0
    %243 = vmatprep.subr.mxu0 0.0
    %244 = vmatpush2.msra.mxu0 0.0
    %245 = vmatprep.mubr.f32.mxu0 0.0
    %246 = vmatmul.mubr.f32.gmra.mxu0 %v170
    %v247 = vpop.f32.mrf.mxu0
    %v248 = vadd.f32 %v166, %v247
    %v249 = vpop.f32.mrf.mxu0
    %250 = vmatprep.mubr.f32.mxu0 0.0
    %251 = vmatmul.mubr.f32.gmra.mxu0 %v173
    %v252 = vpop.f32.mrf.mxu0
    %v253 = vadd.f32 %v166, %v252
    %v254 = vpop.f32.mrf.mxu0
    %255 = vmatprep.mubr.f32.mxu0 0.0
    %256 = vmatmul.mubr.f32.gmra.mxu0 %v176
    %v257 = vpop.f32.mrf.mxu0
    %v258 = vadd.f32 %v166, %v257
    %v259 = vpop.f32.mrf.mxu0
    %260 = vmatprep.mubr.f32.mxu0 0.0
    %261 = vmatmul.mubr.f32.gmra.mxu0 %v179
    %v262 = vpop.f32.mrf.mxu0
    %v263 = vadd.f32 %v166, %v262
    %v264 = vpop.f32.mrf.mxu0
    %265 = vdwg.mxu0
    %v266 = vmax.f32 %v248, 0.0
    %v267 = vmax.f32 %v253, 0.0
    %v268 = vmax.f32 %v258, 0.0
    %v269 = vmax.f32 %v263, 0.0
    %v270 = vld [vmem:[%s5] sm:$0xff]
    %v271 = vld [vmem:[%s6] sm:$0x1]
    %v273 = vlaneseq
    %v274 = vshrl.u32 %v273, 7
    %v275 = vsub.s32 0, %v274
    %v276 = vrot.slane %v271, %v275
    %vm278 = vcmask 64512
    %v280 = vsel %vm278, %v266, 0
    %v283 = vsel %vm278, %v267, 0
    %v286 = vsel %vm278, %v268, 0
    %v289 = vsel %vm278, %v269, 0
    %291 = vmatprep.subr.mxu0 0.0
    %292 = vmatpush1.msra.mxu0 0.0
    %293 = vmatprep.subr.mxu0 0.0
    %294 = vmatpush1.msra.mxu0 0.0
    %295 = vmatprep.subr.mxu0 0.0
    %296 = vmatpush1.msra.mxu0 0.0
    %297 = vmatprep.subr.mxu0 0.0
    %298 = vmatpush1.msra.mxu0 0.0
    %299 = vmatprep.subr.mxu0 0.0
    %300 = vmatpush1.msra.mxu0 0.0
    %301 = vmatprep.subr.mxu0 0.0
    %302 = vmatpush1.msra.mxu0 0.0
    %303 = vmatprep.subr.mxu0 0.0
    %304 = vmatpush1.msra.mxu0 0.0
    %305 = vmatprep.subr.mxu0 0.0
    %306 = vmatpush1.msra.mxu0 0.0
    %307 = vmatprep.subr.mxu0 0.0
    %308 = vmatpush1.msra.mxu0 0.0
    %309 = vmatprep.subr.mxu0 0.0
    %310 = vmatpush1.msra.mxu0 0.0
    %311 = vmatprep.subr.mxu0 0.0
    %312 = vmatpush1.msra.mxu0 0.0
    %313 = vmatprep.subr.mxu0 0.0
    %314 = vmatpush1.msra.mxu0 0.0
    %315 = vmatprep.subr.mxu0 0.0
    %316 = vmatpush1.msra.mxu0 0.0
    %317 = vmatprep.subr.mxu0 0.0
    %318 = vmatpush1.msra.mxu0 0.0
    %319 = vmatprep.subr.mxu0 0.0
    %320 = vmatpush1.msra.mxu0 0.0
    %321 = vmatprep.subr.mxu0 0.0
    %322 = vmatpush1.msra.mxu0 %v270
    %323 = vmatprep.subr.mxu0 0.0
    %324 = vmatpush2.msra.mxu0 0.0
    %325 = vmatprep.subr.mxu0 0.0
    %326 = vmatpush2.msra.mxu0 0.0
    %327 = vmatprep.subr.mxu0 0.0
    %328 = vmatpush2.msra.mxu0 0.0
    %329 = vmatprep.subr.mxu0 0.0
    %330 = vmatpush2.msra.mxu0 0.0
    %331 = vmatprep.subr.mxu0 0.0
    %332 = vmatpush2.msra.mxu0 0.0
    %333 = vmatprep.subr.mxu0 0.0
    %334 = vmatpush2.msra.mxu0 0.0
    %335 = vmatprep.subr.mxu0 0.0
    %336 = vmatpush2.msra.mxu0 0.0
    %337 = vmatprep.subr.mxu0 0.0
    %338 = vmatpush2.msra.mxu0 0.0
    %339 = vmatprep.subr.mxu0 0.0
    %340 = vmatpush2.msra.mxu0 0.0
    %341 = vmatprep.subr.mxu0 0.0
    %342 = vmatpush2.msra.mxu0 0.0
    %343 = vmatprep.subr.mxu0 0.0
    %344 = vmatpush2.msra.mxu0 0.0
    %345 = vmatprep.subr.mxu0 0.0
    %346 = vmatpush2.msra.mxu0 0.0
    %347 = vmatprep.subr.mxu0 0.0
    %348 = vmatpush2.msra.mxu0 0.0
    %349 = vmatprep.subr.mxu0 0.0
    %350 = vmatpush2.msra.mxu0 0.0
    %351 = vmatprep.subr.mxu0 0.0
    %352 = vmatpush2.msra.mxu0 0.0
    %353 = vmatprep.subr.mxu0 0.0
    %354 = vmatpush2.msra.mxu0 0.0
    %355 = vmatprep.mubr.f32.mxu0 0.0
    %356 = vmatmul.mubr.f32.gmra.mxu0 %v280
    %v357 = vpop.f32.mrf.mxu0
    %v358 = vadd.f32 %v276, %v357
    %v359 = vpop.f32.mrf.mxu0
    %360 = vmatprep.mubr.f32.mxu0 0.0
    %361 = vmatmul.mubr.f32.gmra.mxu0 %v283
    %v362 = vpop.f32.mrf.mxu0
    %v363 = vadd.f32 %v276, %v362
    %v364 = vpop.f32.mrf.mxu0
    %365 = vmatprep.mubr.f32.mxu0 0.0
    %366 = vmatmul.mubr.f32.gmra.mxu0 %v286
    %v367 = vpop.f32.mrf.mxu0
    %v368 = vadd.f32 %v276, %v367
    %v369 = vpop.f32.mrf.mxu0
    %370 = vmatprep.mubr.f32.mxu0 0.0
    %371 = vmatmul.mubr.f32.gmra.mxu0 %v289
    %v372 = vpop.f32.mrf.mxu0
    %v373 = vadd.f32 %v276, %v372
    %v374 = vpop.f32.mrf.mxu0
    %375 = vdwg.mxu0
    %v376 = vlaneseq
    %v377 = vand.u32 %v376, 127
    %vm378 = vcmp.gt.f32.partialorder %v358, 0.0
    %vm379 = vcmp.gt.f32.partialorder %v363, 0.0
    %vm380 = vcmp.gt.f32.partialorder %v368, 0.0
    %vm381 = vcmp.gt.f32.partialorder %v373, 0.0
    %vm382 = vcmp.lt.s32.totalorder %v377, 8
    %v383 = vmul.f32 %v358, 0.01
    %v384 = vmul.f32 %v363, 0.01
    %v385 = vmul.f32 %v368, 0.01
    %v386 = vmul.f32 %v373, 0.01
    %v387 = vsel %vm382, %v383, 0.0
    %v388 = vsel %vm382, %v384, 0.0
    %v389 = vsel %vm382, %v385, 0.0
    %v390 = vsel %vm382, %v386, 0.0
    %v391 = vsel %vm378, %v358, %v387
    %v392 = vsel %vm379, %v363, %v388
    %v393 = vsel %vm380, %v368, %v389
    %v394 = vsel %vm381, %v373, %v390
    %v395 = vld [vmem:[%s7] sm:$0xff]
    %v396 = vld [vmem:[%s8] sm:$0x1]
    %v398 = vlaneseq
    %v399 = vshrl.u32 %v398, 7
    %v400 = vsub.s32 0, %v399
    %v401 = vrot.slane %v396, %v400
    %v404 = vsel %vm278, %v391, 0
    %v407 = vsel %vm278, %v392, 0
    %v410 = vsel %vm278, %v393, 0
    %v413 = vsel %vm278, %v394, 0
    %415 = vmatprep.subr.mxu0 0.0
    %416 = vmatpush1.msra.mxu0 0.0
    %417 = vmatprep.subr.mxu0 0.0
    %418 = vmatpush1.msra.mxu0 0.0
    %419 = vmatprep.subr.mxu0 0.0
    %420 = vmatpush1.msra.mxu0 0.0
    %421 = vmatprep.subr.mxu0 0.0
    %422 = vmatpush1.msra.mxu0 0.0
    %423 = vmatprep.subr.mxu0 0.0
    %424 = vmatpush1.msra.mxu0 0.0
    %425 = vmatprep.subr.mxu0 0.0
    %426 = vmatpush1.msra.mxu0 0.0
    %427 = vmatprep.subr.mxu0 0.0
    %428 = vmatpush1.msra.mxu0 0.0
    %429 = vmatprep.subr.mxu0 0.0
    %430 = vmatpush1.msra.mxu0 0.0
    %431 = vmatprep.subr.mxu0 0.0
    %432 = vmatpush1.msra.mxu0 0.0
    %433 = vmatprep.subr.mxu0 0.0
    %434 = vmatpush1.msra.mxu0 0.0
    %435 = vmatprep.subr.mxu0 0.0
    %436 = vmatpush1.msra.mxu0 0.0
    %437 = vmatprep.subr.mxu0 0.0
    %438 = vmatpush1.msra.mxu0 0.0
    %439 = vmatprep.subr.mxu0 0.0
    %440 = vmatpush1.msra.mxu0 0.0
    %441 = vmatprep.subr.mxu0 0.0
    %442 = vmatpush1.msra.mxu0 0.0
    %443 = vmatprep.subr.mxu0 0.0
    %444 = vmatpush1.msra.mxu0 0.0
    %445 = vmatprep.subr.mxu0 0.0
    %446 = vmatpush1.msra.mxu0 %v395
    %447 = vmatprep.subr.mxu0 0.0
    %448 = vmatpush2.msra.mxu0 0.0
    %449 = vmatprep.subr.mxu0 0.0
    %450 = vmatpush2.msra.mxu0 0.0
    %451 = vmatprep.subr.mxu0 0.0
    %452 = vmatpush2.msra.mxu0 0.0
    %453 = vmatprep.subr.mxu0 0.0
    %454 = vmatpush2.msra.mxu0 0.0
    %455 = vmatprep.subr.mxu0 0.0
    %456 = vmatpush2.msra.mxu0 0.0
    %457 = vmatprep.subr.mxu0 0.0
    %458 = vmatpush2.msra.mxu0 0.0
    %459 = vmatprep.subr.mxu0 0.0
    %460 = vmatpush2.msra.mxu0 0.0
    %461 = vmatprep.subr.mxu0 0.0
    %462 = vmatpush2.msra.mxu0 0.0
    %463 = vmatprep.subr.mxu0 0.0
    %464 = vmatpush2.msra.mxu0 0.0
    %465 = vmatprep.subr.mxu0 0.0
    %466 = vmatpush2.msra.mxu0 0.0
    %467 = vmatprep.subr.mxu0 0.0
    %468 = vmatpush2.msra.mxu0 0.0
    %469 = vmatprep.subr.mxu0 0.0
    %470 = vmatpush2.msra.mxu0 0.0
    %471 = vmatprep.subr.mxu0 0.0
    %472 = vmatpush2.msra.mxu0 0.0
    %473 = vmatprep.subr.mxu0 0.0
    %474 = vmatpush2.msra.mxu0 0.0
    %475 = vmatprep.subr.mxu0 0.0
    %476 = vmatpush2.msra.mxu0 0.0
    %477 = vmatprep.subr.mxu0 0.0
    %478 = vmatpush2.msra.mxu0 0.0
    %479 = vmatprep.mubr.f32.mxu0 0.0
    %480 = vmatmul.mubr.f32.gmra.mxu0 %v404
    %v481 = vpop.f32.mrf.mxu0
    %v482 = vadd.f32 %v401, %v481
    %v483 = vpop.f32.mrf.mxu0
    %484 = vmatprep.mubr.f32.mxu0 0.0
    %485 = vmatmul.mubr.f32.gmra.mxu0 %v407
    %v486 = vpop.f32.mrf.mxu0
    %v487 = vadd.f32 %v401, %v486
    %v488 = vpop.f32.mrf.mxu0
    %489 = vmatprep.mubr.f32.mxu0 0.0
    %490 = vmatmul.mubr.f32.gmra.mxu0 %v410
    %v491 = vpop.f32.mrf.mxu0
    %v492 = vadd.f32 %v401, %v491
    %v493 = vpop.f32.mrf.mxu0
    %494 = vmatprep.mubr.f32.mxu0 0.0
    %495 = vmatmul.mubr.f32.gmra.mxu0 %v413
    %v496 = vpop.f32.mrf.mxu0
    %v497 = vadd.f32 %v401, %v496
    %v498 = vpop.f32.mrf.mxu0
    %499 = vdwg.mxu0
    %v500 = vmul.f32 %v482, %v482
    %v501 = vmul.f32 %v487, %v487
    %v502 = vmul.f32 %v492, %v492
    %v503 = vmul.f32 %v497, %v497
    %v504 = vsel %vm278, %v500, 0.0
    %505 = vadd.xlane.f32.xlu0 %v504
    %v506 = vpop.xlane.xlu0 %505
    %v507 = vsel %vm278, %v501, 0.0
    %508 = vadd.xlane.f32.xlu0 %v507
    %v509 = vpop.xlane.xlu0 %508
    %v510 = vsel %vm278, %v502, 0.0
    %511 = vadd.xlane.f32.xlu0 %v510
    %v512 = vpop.xlane.xlu0 %511
    %v513 = vsel %vm278, %v503, 0.0
    %514 = vadd.xlane.f32.xlu0 %v513
    %v515 = vpop.xlane.xlu0 %514
    %v516 = vmax.f32 %v506, 1e-24
    %v517 = vmax.f32 %v509, 1e-24
    %v518 = vmax.f32 %v512, 1e-24
    %v519 = vmax.f32 %v515, 1e-24
    %v520 = vrsqrt.pop %v516
    %v521 = vrsqrt.pop %v517
    %v522 = vrsqrt.pop %v518
    %v523 = vrsqrt.pop %v519
    %v524 = vmul.f32 %v482, %v520
    %v525 = vmul.f32 %v487, %v521
    %v526 = vmul.f32 %v492, %v522
    %v527 = vmul.f32 %v497, %v523
    %v528 = vld [vmem:[%s9] sm:$0xff]
    %v529 = vld [vmem:[%s9 + $0x8] sm:$0xff]
    %v530 = vld [vmem:[%s9 + $0x10] sm:$0xff]
    %v531 = vld [vmem:[%s9 + $0x18] sm:$0xff]
    %v532 = vld [vmem:[%s10] sm:$0x1]
    %v534 = vlaneseq
    %v535 = vshrl.u32 %v534, 7
    %v536 = vsub.s32 0, %v535
    %v537 = vrot.slane %v532, %v536
    %539 = vrot.lane.b32.xlu0 %v391, 120
    %v540 = vpop.permute.xlu0 %539
    %541 = vrot.lane.b32.xlu0 %v392, 120
    %v542 = vpop.permute.xlu0 %541
    %543 = vrot.lane.b32.xlu0 %v393, 120
    %v544 = vpop.permute.xlu0 %543
    %545 = vrot.lane.b32.xlu0 %v394, 120
    %v546 = vpop.permute.xlu0 %545
    %v547 = vsel %vm168, %v540, 0
    %v549 = vsel %vm168, %v542, 0
    %v551 = vsel %vm168, %v544, 0
    %v553 = vsel %vm168, %v546, 0
    %555 = vmatprep.subr.mxu0 0.0
    %556 = vmatpush1.msra.mxu0 0.0
    %557 = vmatprep.subr.mxu0 0.0
    %558 = vmatpush1.msra.mxu0 0.0
    %559 = vmatprep.subr.mxu0 0.0
    %560 = vmatpush1.msra.mxu0 0.0
    %561 = vmatprep.subr.mxu0 0.0
    %562 = vmatpush1.msra.mxu0 0.0
    %563 = vmatprep.subr.mxu0 0.0
    %564 = vmatpush1.msra.mxu0 0.0
    %565 = vmatprep.subr.mxu0 0.0
    %566 = vmatpush1.msra.mxu0 0.0
    %567 = vmatprep.subr.mxu0 0.0
    %568 = vmatpush1.msra.mxu0 0.0
    %569 = vmatprep.subr.mxu0 0.0
    %570 = vmatpush1.msra.mxu0 0.0
    %571 = vmatprep.subr.mxu0 0.0
    %572 = vmatpush1.msra.mxu0 0.0
    %573 = vmatprep.subr.mxu0 0.0
    %574 = vmatpush1.msra.mxu0 0.0
    %575 = vmatprep.subr.mxu0 0.0
    %576 = vmatpush1.msra.mxu0 0.0
    %577 = vmatprep.subr.mxu0 0.0
    %578 = vmatpush1.msra.mxu0 0.0
    %579 = vmatprep.subr.mxu0 0.0
    %580 = vmatpush1.msra.mxu0 %v531
    %581 = vmatprep.subr.mxu0 0.0
    %582 = vmatpush1.msra.mxu0 %v530
    %583 = vmatprep.subr.mxu0 0.0
    %584 = vmatpush1.msra.mxu0 %v529
    %585 = vmatprep.subr.mxu0 0.0
    %586 = vmatpush1.msra.mxu0 %v528
    %587 = vmatprep.subr.mxu0 0.0
    %588 = vmatpush2.msra.mxu0 0.0
    %589 = vmatprep.subr.mxu0 0.0
    %590 = vmatpush2.msra.mxu0 0.0
    %591 = vmatprep.subr.mxu0 0.0
    %592 = vmatpush2.msra.mxu0 0.0
    %593 = vmatprep.subr.mxu0 0.0
    %594 = vmatpush2.msra.mxu0 0.0
    %595 = vmatprep.subr.mxu0 0.0
    %596 = vmatpush2.msra.mxu0 0.0
    %597 = vmatprep.subr.mxu0 0.0
    %598 = vmatpush2.msra.mxu0 0.0
    %599 = vmatprep.subr.mxu0 0.0
    %600 = vmatpush2.msra.mxu0 0.0
    %601 = vmatprep.subr.mxu0 0.0
    %602 = vmatpush2.msra.mxu0 0.0
    %603 = vmatprep.subr.mxu0 0.0
    %604 = vmatpush2.msra.mxu0 0.0
    %605 = vmatprep.subr.mxu0 0.0
    %606 = vmatpush2.msra.mxu0 0.0
    %607 = vmatprep.subr.mxu0 0.0
    %608 = vmatpush2.msra.mxu0 0.0
    %609 = vmatprep.subr.mxu0 0.0
    %610 = vmatpush2.msra.mxu0 0.0
    %611 = vmatprep.subr.mxu0 0.0
    %612 = vmatpush2.msra.mxu0 0.0
    %613 = vmatprep.subr.mxu0 0.0
    %614 = vmatpush2.msra.mxu0 0.0
    %615 = vmatprep.subr.mxu0 0.0
    %616 = vmatpush2.msra.mxu0 0.0
    %617 = vmatprep.subr.mxu0 0.0
    %618 = vmatpush2.msra.mxu0 0.0
    %619 = vmatprep.mubr.f32.mxu0 0.0
    %620 = vmatmul.mubr.f32.gmra.mxu0 %v547
    %v621 = vpop.f32.mrf.mxu0
    %v622 = vadd.f32 %v537, %v621
    %v623 = vpop.f32.mrf.mxu0
    %624 = vmatprep.mubr.f32.mxu0 0.0
    %625 = vmatmul.mubr.f32.gmra.mxu0 %v549
    %v626 = vpop.f32.mrf.mxu0
    %v627 = vadd.f32 %v537, %v626
    %v628 = vpop.f32.mrf.mxu0
    %629 = vmatprep.mubr.f32.mxu0 0.0
    %630 = vmatmul.mubr.f32.gmra.mxu0 %v551
    %v631 = vpop.f32.mrf.mxu0
    %v632 = vadd.f32 %v537, %v631
    %v633 = vpop.f32.mrf.mxu0
    %634 = vmatprep.mubr.f32.mxu0 0.0
    %635 = vmatmul.mubr.f32.gmra.mxu0 %v553
    %v636 = vpop.f32.mrf.mxu0
    %v637 = vadd.f32 %v537, %v636
    %v638 = vpop.f32.mrf.mxu0
    %639 = vdwg.mxu0
    %vm640 = vcmp.lt.s32.totalorder %v377, 10
    %v641 = vmax.f32 %v622, 0.0
    %v642 = vmax.f32 %v627, 0.0
    %v643 = vmax.f32 %v632, 0.0
    %v644 = vmax.f32 %v637, 0.0
    %v645 = vxor.u32 %v622, 2147483648
    %v646 = vxor.u32 %v627, 2147483648
    %v647 = vxor.u32 %v632, 2147483648
    %v648 = vxor.u32 %v637, 2147483648
    %v649 = vmul.f32 %v645, 1.442695
    %v650 = vpow.pop %v649
    %v651 = vmul.f32 %v646, 1.442695
    %v652 = vpow.pop %v651
    %v653 = vmul.f32 %v647, 1.442695
    %v654 = vpow.pop %v653
    %v655 = vmul.f32 %v648, 1.442695
    %v656 = vpow.pop %v655
    %v657 = vadd.f32 %v650, 1.0
    %v658 = vadd.f32 %v652, 1.0
    %v659 = vadd.f32 %v654, 1.0
    %v660 = vadd.f32 %v656, 1.0
    %v661 = vrcp.pop %v657
    %v662 = vmul.f32 1.0, %v661
    %v663 = vrcp.pop %v658
    %v664 = vmul.f32 1.0, %v663
    %v665 = vrcp.pop %v659
    %v666 = vmul.f32 1.0, %v665
    %v667 = vrcp.pop %v660
    %v668 = vmul.f32 1.0, %v667
    %v669 = vsel %vm640, %v641, %v662
    %v670 = vsel %vm640, %v642, %v664
    %v671 = vsel %vm640, %v643, %v666
    %v672 = vsel %vm640, %v644, %v668
    %673 = vrot.lane.b32.xlu0 %v266, 8
    %v674 = vpop.permute.xlu0 %673
    %675 = vrot.lane.b32.xlu0 %v267, 8
    %v676 = vpop.permute.xlu0 %675
    %677 = vrot.lane.b32.xlu0 %v268, 8
    %v678 = vpop.permute.xlu0 %677
    %679 = vrot.lane.b32.xlu0 %v269, 8
    %v680 = vpop.permute.xlu0 %679
    %689 = vrot.lane.b32.xlu0 %v669, 16
    %v690 = vpop.permute.xlu0 %689
    %691 = vrot.lane.b32.xlu0 %v670, 16
    %v692 = vpop.permute.xlu0 %691
    %693 = vrot.lane.b32.xlu0 %v671, 16
    %v694 = vpop.permute.xlu0 %693
    %695 = vrot.lane.b32.xlu0 %v672, 16
    %v696 = vpop.permute.xlu0 %695
    %v701 = vsel %vm278, %v524, %v674
    %v702 = vsel %vm278, %v525, %v676
    %v703 = vsel %vm278, %v526, %v678
    %v704 = vsel %vm278, %v527, %v680
    %vm705 = vcmask 130048
    %v706 = vsel %vm705, %v701, %v690
    %v707 = vsel %vm705, %v702, %v692
    %v708 = vsel %vm705, %v703, %v694
    %v709 = vsel %vm705, %v704, %v696
    %710 = vst.msk [vmem:[#allocation2] sm:$0xff] %vm168, %v706
    %711 = vst.msk [vmem:[#allocation2 + $0x8] sm:$0xff] %vm168, %v707
    %712 = vst.msk [vmem:[#allocation2 + $0x10] sm:$0xff] %vm168, %v708
    %713 = vst.msk [vmem:[#allocation2 + $0x18] sm:$0xff] %vm168, %v709
    // Predicated region
    $region46: #{tpu_custom_call.1} parent=1 // pred_check
      _
    $region47: #{tpu_custom_call.1} parent=1 // pred_check_branch
      %715 = sbr.rel (0) target = $region49
    $region48: #{tpu_custom_call.1} parent=1 // pred_region
      %s717 = ssub.s32 512, 512
      %718 = vsyncadd [#allocation3], %s717
      %s719 = sshll.u32 [#allocation2], 4
      %s720 = int_to_ptr.vmem [resolvable:$true] %s719
      %725 = dma.vmem_to_hbm [thread:$0]  %s720, 512, %s11, [#allocation3], 128, 128, 8
    $region49: #{tpu_custom_call.1} parent=1 // pred_fallthru
      _
    // Predicated region
    $region50: #{tpu_custom_call.1} parent=1 // pred_check
      _
    $region51: #{tpu_custom_call.1} parent=1 // pred_check_branch
      %727 = sbr.rel (0) target = $region53
    $region52: #{tpu_custom_call.1} parent=1 // pred_region
      %728 = dma.done [#allocation3], 512
    $region53: #{tpu_custom_call.1} parent=1 // pred_fallthru
      _
    %729 = vsyncpa [#allocation3], 1

</llo_original>
